<compile_context>
chip_gen: v5e
topology: v5e:2x2
jax: 0.10.0
libtpu: 0.0.40
codegen_flags: <defaults>
</compile_context>

<pallas_src>
import functools

import jax
import jax.numpy as jnp
from jax.experimental import pallas as pl
from jax.experimental.pallas import tpu as pltpu

_LANE_CANDIDATES = (32768, 16384, 8192, 4096, 2048, 1024, 512, 256, 128)
_SUBLANE_MIN = {4: 8, 2: 16, 1: 32}  # min second-to-last tile dim by element width


def _scale_kernel(param_ref, x_ref, o_ref):
    # param_ref: (1,) f32 scalar in SMEM; x_ref / o_ref: (tile_rows, lane) VMEM tiles.
    x = x_ref[...]
    if jnp.issubdtype(x_ref.dtype, jnp.floating) and jnp.dtype(x_ref.dtype).itemsize < 4:
        # bf16/fp16: multiply in the native packed dtype (halves vreg/VALU pressure
        # on v6e/v7x); v5e lowering promotes internally as needed.
        scale = param_ref[0].astype(x_ref.dtype)
    else:
        scale = param_ref[0]
    o_ref[...] = (scale * x).astype(o_ref.dtype)


@functools.lru_cache(maxsize=1)
def _tpu_tuning():
    """(block_bytes_per_array, vmem_limit_bytes), generation-conditional."""
    block_bytes = 6 * 1024 * 1024       # v6e/v7x: amortize ~0.35us/step overhead
    vmem_limit = 48 * 1024 * 1024       # <= v7x 64 MiB per-TC physical VMEM
    try:
        kind = jax.devices()[0].device_kind.lower()
        if "v5" in kind and ("lite" in kind or "5e" in kind):
            # v5e: ~820 GB/s, a 2 MiB step is already ~5us; bigger tiles buy nothing.
            block_bytes = 2 * 1024 * 1024
    except Exception:
        pass
    return block_bytes, vmem_limit


def _xla_scale(x, param_f32):
    """Plain-XLA scale that mirrors the kernel's dtype handling (ragged-tail only)."""
    dtype = x.dtype
    if jnp.issubdtype(dtype, jnp.floating) and jnp.dtype(dtype).itemsize < 4:
        return (param_f32[0].astype(dtype) * x).astype(dtype)
    return (param_f32[0] * x).astype(dtype)


def scale_by_param(x: jax.Array, param: jax.Array) -> jax.Array:
    """Computes param * x (elementwise scalar scale) with a Pallas TPU kernel."""
    orig_shape = x.shape
    dtype = x.dtype
    itemsize = jnp.dtype(dtype).itemsize
    assert itemsize in (1, 2, 4), f"unsupported element width {itemsize}B for TPU tiling"
    n = x.size
    param_f32 = jnp.asarray(param).reshape(-1).astype(jnp.float32)

    if n == 0:
        return x

    lane = next((c for c in _LANE_CANDIDATES if n % c == 0), None)

    if lane is None:
        # Ragged total size: run the 128-divisible prefix through the wide kernel,
        # handle only the tiny (<128 element) tail in XLA. No full-array pad/slice.
        flat = x.reshape(-1)
        n_main = (n // 128) * 128
        tail = _xla_scale(flat[n_main:], param_f32)
        if n_main == 0:
            out_flat = tail
        else:
            head = scale_by_param(flat[:n_main], param_f32).reshape(-1)
            out_flat = jnp.concatenate([head, tail])
        return out_flat.reshape(orig_shape)

    sublane = _SUBLANE_MIN[itemsize]
    rows = n // lane
    x2d = x.reshape(rows, lane)

    block_bytes, vmem_limit = _tpu_tuning()
    budget = max(sublane, (block_bytes // (lane * itemsize)) // sublane * sublane)

    if rows <= sublane:
        # Single block equal to the full array shape ((8,128) exemption).
        tile_rows = rows
    else:
        # At least 2 blocks: lets the "parallel" axis shard across both v7x
        # TensorCores and keeps input/output DMAs pipelined. Tile rows stay a
        # multiple of the dtype sublane; blocks are balanced across the grid.
        num_blocks = max(2, pl.cdiv(rows, budget))
        tile_rows = min(rows, pl.cdiv(pl.cdiv(rows, num_blocks), sublane) * sublane)
    grid = (pl.cdiv(rows, tile_rows),)

    out2d = pl.pallas_call(
        _scale_kernel,
        out_shape=jax.ShapeDtypeStruct((rows, lane), dtype),
        grid_spec=pl.GridSpec(
            grid=grid,
            in_specs=[
                pl.BlockSpec(memory_space=pltpu.MemorySpace.SMEM),   # scalar param
                pl.BlockSpec((tile_rows, lane), lambda i: (i, 0)),   # x row-tile
            ],
            out_specs=pl.BlockSpec((tile_rows, lane), lambda i: (i, 0)),
        ),
        compiler_params=pltpu.CompilerParams(
            dimension_semantics=("parallel",),   # shard row-tiles across TCs on v7x
            vmem_limit_bytes=vmem_limit,
        ),
        cost_estimate=pl.CostEstimate(
            flops=n, transcendentals=0, bytes_accessed=2 * n * itemsize
        ),
    )(param_f32, x2d)

    return out2d.reshape(orig_shape)


if __name__ == "__main__":
    key = jax.random.PRNGKey(0)

    # Deterministic parameter init matching nn.Parameter(torch.tensor([1.0])).
    param = jnp.array([1.0], dtype=jnp.float32)

    # Small NCHW input consistent with the module's forward (pure elementwise).
    x = jax.random.normal(key, (2, 4, 16, 16), dtype=jnp.float32)
    out = scale_by_param(x, param)
    jax.block_until_ready(out)
    assert out.shape == x.shape and out.dtype == x.dtype
    assert jnp.allclose(out, param[0] * x, atol=1e-6, rtol=1e-6)

    # Medium f32 input: exercises the wide-lane, multi-block pipelined grid path.
    k1, k2 = jax.random.split(key)
    x_big = jax.random.normal(k1, (8, 64, 32, 128), dtype=jnp.float32)
    out_big = scale_by_param(x_big, param)
    jax.block_until_ready(out_big)
    assert jnp.allclose(out_big, param[0] * x_big, atol=1e-6, rtol=1e-6)

    # bf16 input: exercises dtype-aware sublane handling + native packed multiply.
    x_bf16 = jax.random.normal(k2, (4, 8, 32, 128), dtype=jnp.bfloat16)
    out_bf16 = scale_by_param(x_bf16, param)
    jax.block_until_ready(out_bf16)
    assert out_bf16.dtype == jnp.bfloat16
    assert jnp.allclose(out_bf16.astype(jnp.float32),
                        (param[0] * x_bf16).astype(jnp.float32), atol=1e-2, rtol=1e-2)

    # Ragged total size: divisible prefix through the kernel, tiny tail in XLA.
    x_rag = jax.random.normal(key, (5, 101), dtype=jnp.float32)
    out_rag = scale_by_param(x_rag, param)
    jax.block_until_ready(out_rag)
    assert out_rag.shape == x_rag.shape
    assert jnp.allclose(out_rag, param[0] * x_rag, atol=1e-6, rtol=1e-6)

    print("KERNEL_OK")
</pallas_src>

<mosaic_0001>
module attributes {stable_mosaic.version = 11 : i64} {
  func.func @_scale_kernel(%arg0: i32, %arg1: memref<1xf32, #tpu.memory_space<smem>>, %arg2: memref<1x2048xf32, #tpu.memory_space<vmem>>, %arg3: memref<1x2048xf32, #tpu.memory_space<vmem>>) attributes {dimension_semantics = [#tpu.dimension_semantics<parallel>], iteration_bounds = array<i64: 1>, scalar_prefetch = 0 : i64, scratch_operands = 0 : i64, tpu.core_type = #tpu.core_type<tc>, window_params = [{transform_indices = @transform_0, window_bounds = array<i64: 1>}, {transform_indices = @transform_1, window_bounds = array<i64: 1, 2048>}, {transform_indices = @transform_2, window_bounds = array<i64: 1, 2048>}]} {
    %c0 = arith.constant 0 : index
    %c0_0 = arith.constant 0 : index
    %0 = vector.load %arg2[%c0, %c0_0] : memref<1x2048xf32, #tpu.memory_space<vmem>>, vector<1x2048xf32>
    %c0_1 = arith.constant 0 : index
    %1 = memref.load %arg1[%c0_1] : memref<1xf32, #tpu.memory_space<smem>>
    %2 = vector.broadcast %1 : f32 to vector<1x2048xf32>
    %3 = arith.mulf %2, %0 : vector<1x2048xf32>
    %c0_2 = arith.constant 0 : index
    %c0_3 = arith.constant 0 : index
    %4 = vector.load %arg3[%c0_2, %c0_3] : memref<1x2048xf32, #tpu.memory_space<vmem>>, vector<1x2048xf32>
    tpu.vector_store %arg3[%c0_2, %c0_3], %3 {strides = array<i32>} : memref<1x2048xf32, #tpu.memory_space<vmem>>, vector<1x2048xf32>,
    return
  }
  func.func @transform_0(%arg0: i32) -> i32 {
    %c0_i32 = arith.constant 0 : i32
    %c0_i32_0 = arith.constant 0 : i32
    return %c0_i32 : i32
  }
  func.func @transform_1(%arg0: i32) -> (i32, i32) {
    %c0_i32 = arith.constant 0 : i32
    %c0_i32_0 = arith.constant 0 : i32
    return %arg0, %c0_i32 : i32, i32
  }
  func.func @transform_2(%arg0: i32) -> (i32, i32) {
    %c0_i32 = arith.constant 0 : i32
    %c0_i32_0 = arith.constant 0 : i32
    return %arg0, %c0_i32 : i32, i32
  }
}

</mosaic_0001>

<llo_original>
// kernel: tpu_custom_call.1
$region0: #{tpu_custom_call.1}
  #allocation0 [shape = 'u32[]', space=smem, size = 0x4, offset = 0x4, fixed_abs, tag = 'smem constant byte address 0x4 - core index']
  #allocation1 [shape = 'u32[72,128]{1,0:T(1,128)}', space=vmem, size = 0x9000, scoped, tag = 'internal scratch']
  #allocation2 [shape = 'f32[1]{0:T(128)S(6)}', space=smem, size = 0x200, scoped, tag = 'scoped memory for tpu_custom_call.1']
  %s0 = inlined_call_operand.<no memory space> [shape: f32[1], index: 0, kind: input, shape index: {}]
  %s1 = inlined_call_operand.hbm [shape: f32[1,2048], index: 1, kind: input, shape index: {}]
  %s2 = inlined_call_operand.hbm [shape: f32[1,2048], index: 2, kind: output, shape index: {}]
  %s3 = sld [smem:[#allocation0]]
  $region22: #{tpu_custom_call.1} parent=0
    _
  %s5 = ssub.s32 1, %s3
  %s6 = scalar_select 0, %s5, %s3
  %7 = sst [smem:[#allocation2]] %s0
  $region1: #{tpu_custom_call.1} parent=0
    #allocation3 [shape = 'u8[8192]{0}', space=vmem, size = 0x2000, scoped, tag = 'input window, operand 1, single buffered']
    #allocation4 [shape = 's32[1]{0}', space=sflag, size = 0x4, scoped, tag = 'scoped memory for tpu_custom_call.1']
    #allocation5 [shape = 's32[1]{0}', space=sflag, size = 0x4, scoped, tag = 'scoped memory for tpu_custom_call.1']
    #allocation6 [shape = 'u8[8192]{0}', space=vmem, size = 0x2000, scoped, tag = 'output window, operand 0, single buffered']
    %8 = vsyncpa [#allocation4], 0
    %9 = vsyncpa [#allocation5], 0
    // Predicated region
    $region2: #{tpu_custom_call.1} parent=1 // pred_check
      _
    $region3: #{tpu_custom_call.1} parent=1 // pred_check_branch
      %11 = sbr.rel (0) target = $region5
    $region4: #{tpu_custom_call.1} parent=1 // pred_region
      _
    $region5: #{tpu_custom_call.1} parent=1 // pred_fallthru
      _
    // Predicated region
    $region6: #{tpu_custom_call.1} parent=1 // pred_check
      _
    $region7: #{tpu_custom_call.1} parent=1 // pred_check_branch
      %13 = sbr.rel (0) target = $region9
    $region8: #{tpu_custom_call.1} parent=1 // pred_region
      %15 = vsyncadd [#allocation4], 0
      %s17 = sshll.u32 %s1, 4
      %s18 = int_to_ptr.hbm [resolvable:$true] %s17
      %s19 = sshll.u32 [#allocation3], 4
      %s20 = int_to_ptr.vmem [resolvable:$true] %s19
      %22 = dma.hbm_to_vmem [thread:$0]  %s18, 256, %s20, [#allocation4]
    $region9: #{tpu_custom_call.1} parent=1 // pred_fallthru
      _
    // Predicated region
    $region10: #{tpu_custom_call.1} parent=1 // pred_check
      _
    $region11: #{tpu_custom_call.1} parent=1 // pred_check_branch
      %24 = sbr.rel (0) target = $region13
    $region12: #{tpu_custom_call.1} parent=1 // pred_region
      %26 = dma.done [#allocation4], 256
    $region13: #{tpu_custom_call.1} parent=1 // pred_fallthru
      _
    %v27 = vld [vmem:[#allocation3] sm:$0xff]
    %v28 = vld [vmem:[#allocation3 + $0x8] sm:$0xff]
    %s29 = sld [smem:[#allocation2]]
    %v30 = vstv %s29
    %v31 = vmul.f32 %v30, %v27
    %v32 = vmul.f32 %v30, %v28
    %33 = vst [vmem:[#allocation6] sm:$0xff] %v31
    %34 = vst [vmem:[#allocation6 + $0x8] sm:$0xff] %v32
    // Predicated region
    $region14: #{tpu_custom_call.1} parent=1 // pred_check
      _
    $region15: #{tpu_custom_call.1} parent=1 // pred_check_branch
      %36 = sbr.rel (0) target = $region17
    $region16: #{tpu_custom_call.1} parent=1 // pred_region
      %38 = vsyncadd [#allocation5], 0
      %s40 = sshll.u32 [#allocation6], 4
      %s41 = int_to_ptr.vmem [resolvable:$true] %s40
      %s42 = sshll.u32 %s2, 4
      %s43 = int_to_ptr.hbm [resolvable:$true] %s42
      %45 = dma.vmem_to_hbm [thread:$0]  %s41, 256, %s43, [#allocation5]
    $region17: #{tpu_custom_call.1} parent=1 // pred_fallthru
      _
    // Predicated region
    $region18: #{tpu_custom_call.1} parent=1 // pred_check
      _
    $region19: #{tpu_custom_call.1} parent=1 // pred_check_branch
      %47 = sbr.rel (0) target = $region21
    $region20: #{tpu_custom_call.1} parent=1 // pred_region
      %49 = dma.done [#allocation5], 256
    $region21: #{tpu_custom_call.1} parent=1 // pred_fallthru
      _
    %50 = vsyncpa [#allocation4], 1
    %51 = vsyncpa [#allocation5], 1

</llo_original>
